<compile_context>
chip_gen: v6e
topology: v6e:2x2x1
jax: 0.10.0
libtpu: 0.0.40
codegen_flags: <defaults>
</compile_context>

<pallas_src>
import functools

import jax
import jax.numpy as jnp
from jax import lax
from jax.experimental import pallas as pl
from jax.experimental.pallas import tpu as pltpu

_LANE_WIDTH = 1024       # lane-dense last dim (multiple of 128)
_MAX_BLOCK_ROWS = 512    # (512, 1024) f32 block = 2 MiB per input
_VMEM_LIMIT = 48 * 1024 * 1024


@functools.lru_cache(maxsize=1)
def _num_tensorcores():
    """Best-effort TensorCores-per-chip count (chunk split only if > 1)."""
    try:
        info = pltpu.get_tpu_info()
        for attr in ("num_cores", "num_tensorcores", "tensorcore_count",
                     "core_count"):
            v = getattr(info, attr, None)
            if isinstance(v, int) and v >= 1:
                return v
    except Exception:
        pass
    try:
        kind = jax.devices()[0].device_kind.lower()
        if any(tag in kind for tag in ("v7", "v5p", "v4")):
            return 2
    except Exception:
        pass
    return 1


def _bce_lsoft(x, t, beta):
    """Per-element L-soft BCE-with-logits loss (f32, numerically stable)."""
    # sigmoid via a single EUP tanh: keeps the f32 divide off the VPU.
    pred = lax.stop_gradient(0.5 * jnp.tanh(0.5 * x) + 0.5)
    t_new = beta * t + (1.0 - beta) * pred
    # stable BCE-with-logits: max(x, 0) - x * t + log1p(exp(-|x|))
    return jnp.maximum(x, 0.0) - x * t_new + jnp.log1p(jnp.exp(-jnp.abs(x)))


def _lsoft_reduce_kernel(x_ref, t_ref, out_ref, acc_ref, *, beta, block_rows,
                         width, acc_rows, tiles_per_chunk, num_tiles,
                         total_tiles, valid_rows_last):
    c = pl.program_id(0)          # chunk (megacore-parallel)
    j = pl.program_id(1)          # tile within chunk (reduction axis)
    tile = c * tiles_per_chunk + j

    @pl.when(j == 0)
    def _init():
        acc_ref[...] = jnp.zeros_like(acc_ref)

    x = x_ref[...].astype(jnp.float32)
    t = t_ref[...].astype(jnp.float32)
    loss = _bce_lsoft(x, t, beta)

    def fold(v):
        # Fold the (block_rows, width) tile into the (acc_rows, width) stripe
        # accumulator with pure VALU adds over contiguous 8-row groups.
        if block_rows == acc_rows:
            return v
        return v.reshape(block_rows // acc_rows, acc_rows, width).sum(axis=0)

    ragged = valid_rows_last != block_rows     # static Python bool
    has_phantom = total_tiles > num_tiles      # static Python bool

    if not ragged and not has_phantom:
        acc_ref[...] += fold(loss)
    else:
        last = num_tiles - 1

        @pl.when(tile < last)
        def _interior():                       # full tiles: no masking cost
            acc_ref[...] += fold(loss)

        @pl.when(tile == last)
        def _last():                           # (possibly) ragged final tile
            if ragged:
                row = lax.broadcasted_iota(jnp.int32, (block_rows, width), 0)
                acc_ref[...] += fold(jnp.where(row < valid_rows_last, loss, 0.0))
            else:
                acc_ref[...] += fold(loss)
        # tile > last: phantom step (clamped DMA), contributes nothing.

    @pl.when(j == tiles_per_chunk - 1)
    def _epilogue():
        out_ref[...] = jnp.sum(acc_ref[...]).reshape(1, 1, 1)


def _lsoft_elementwise_kernel(x_ref, t_ref, o_ref, *, beta):
    x = x_ref[...].astype(jnp.float32)
    t = t_ref[...].astype(jnp.float32)
    o_ref[...] = _bce_lsoft(x, t, beta).astype(o_ref.dtype)


def _plan(n):
    """Pick (width, n_main, rows, block_rows, num_tiles); None -> pure JAX."""
    if n >= _LANE_WIDTH:
        width = _LANE_WIDTH
    elif n >= 128:
        width = (n // 128) * 128
    else:
        return None
    n_main = (n // width) * width
    rows = n_main // width
    block_rows = rows if rows <= _MAX_BLOCK_ROWS else _MAX_BLOCK_ROWS
    num_tiles = pl.cdiv(rows, block_rows)
    return width, n_main, rows, block_rows, num_tiles


def lsoft_loss(logits, target, *, beta=0.5, reduction="mean"):
    """JAX/Pallas equivalent of LSoftLoss.forward(input, target)."""
    if reduction not in ("mean", "sum", "none"):
        raise ValueError(f"unsupported reduction: {reduction}")
    beta = float(beta)
    orig_shape = logits.shape
    out_dtype = logits.dtype
    n = logits.size

    x = logits.reshape(-1)     # free row-major bitcast
    t = target.reshape(-1)

    plan = _plan(n)
    if plan is None:
        # Tiny inputs (< 128 elements): a kernel launch is not worth it.
        loss = _bce_lsoft(x.astype(jnp.float32), t.astype(jnp.float32), beta)
        if reduction == "mean":
            return jnp.mean(loss).astype(out_dtype)
        if reduction == "sum":
            return jnp.sum(loss).astype(out_dtype)
        return loss.astype(out_dtype).reshape(orig_shape)

    width, n_main, rows, block_rows, num_tiles = plan

    # Sub-`width` tail (only when n % width != 0) is a tiny plain-JAX epilogue;
    # the prefix slice below is the only host-side copy and only happens then.
    if n_main < n:
        tail_loss = _bce_lsoft(x[n_main:].astype(jnp.float32),
                               t[n_main:].astype(jnp.float32), beta)
        x, t = x[:n_main], t[:n_main]
    else:
        tail_loss = None
    x2 = x.reshape(rows, width)        # free reshape, native dtype streaming
    t2 = t.reshape(rows, width)
    in_itemsize = x2.dtype.itemsize + t2.dtype.itemsize

    if reduction in ("mean", "sum"):
        num_chunks = _num_tensorcores() if num_tiles >= 2 else 1
        num_chunks = max(1, min(num_chunks, num_tiles))
        tiles_per_chunk = pl.cdiv(num_tiles, num_chunks)
        total_tiles = num_chunks * tiles_per_chunk
        valid_rows_last = rows - (num_tiles - 1) * block_rows
        acc_rows = 8 if block_rows % 8 == 0 else block_rows

        if total_tiles > num_tiles:
            def in_idx(c, j):
                # Clamp phantom steps onto the last real tile (in-bounds DMA);
                # the kernel skips their contribution.
                return (jnp.minimum(c * tiles_per_chunk + j, num_tiles - 1), 0)
        else:
            def in_idx(c, j):
                return (c * tiles_per_chunk + j, 0)
        in_spec = pl.BlockSpec((block_rows, width), in_idx)

        cost = pl.CostEstimate(
            flops=int(12 * n_main),
            transcendentals=int(3 * n_main),
            bytes_accessed=int(n_main * in_itemsize + 4 * num_chunks))

        partials = pl.pallas_call(
            functools.partial(
                _lsoft_reduce_kernel, beta=beta, block_rows=block_rows,
                width=width, acc_rows=acc_rows,
                tiles_per_chunk=tiles_per_chunk, num_tiles=num_tiles,
                total_tiles=total_tiles, valid_rows_last=valid_rows_last),
            out_shape=jax.ShapeDtypeStruct((num_chunks, 1, 1), jnp.float32),
            grid_spec=pltpu.PrefetchScalarGridSpec(
                num_scalar_prefetch=0,
                grid=(num_chunks, tiles_per_chunk),
                in_specs=[in_spec, in_spec],
                out_specs=pl.BlockSpec((1, 1, 1), lambda c, j: (c, 0, 0)),
                scratch_shapes=[pltpu.VMEM((acc_rows, width), jnp.float32)],
            ),
            compiler_params=pltpu.CompilerParams(
                dimension_semantics=("parallel", "arbitrary"),
                vmem_limit_bytes=_VMEM_LIMIT),
            cost_estimate=cost,
        )(x2, t2)

        total = jnp.sum(partials)                 # sum of per-chunk partials
        if tail_loss is not None:
            total = total + jnp.sum(tail_loss)
        if reduction == "mean":
            total = total / jnp.float32(n)
        return total.astype(out_dtype)

    # reduction == "none": pure elementwise, lane-dense output blocks.
    tile_spec = pl.BlockSpec((block_rows, width), lambda i: (i, 0))
    cost = pl.CostEstimate(
        flops=int(12 * n_main),
        transcendentals=int(3 * n_main),
        bytes_accessed=int(n_main * (in_itemsize + jnp.dtype(out_dtype).itemsize)))
    main = pl.pallas_call(
        functools.partial(_lsoft_elementwise_kernel, beta=beta),
        out_shape=jax.ShapeDtypeStruct((rows, width), out_dtype),
        grid_spec=pltpu.PrefetchScalarGridSpec(
            num_scalar_prefetch=0,
            grid=(num_tiles,),
            in_specs=[tile_spec, tile_spec],
            out_specs=tile_spec,
        ),
        compiler_params=pltpu.CompilerParams(
            dimension_semantics=("parallel",),
            vmem_limit_bytes=_VMEM_LIMIT),
        cost_estimate=cost,
    )(x2, t2)
    flat = main.reshape(-1)
    if tail_loss is not None:
        flat = jnp.concatenate([flat, tail_loss.astype(out_dtype)])
    return flat.reshape(orig_shape)


def _lsoft_loss_ref(logits, target, beta=0.5, reduction="mean"):
    """Pure-JAX reference (mirrors the PyTorch module)."""
    x = logits.astype(jnp.float32)
    t = target.astype(jnp.float32)
    pred = lax.stop_gradient(jax.nn.sigmoid(x))
    t_new = beta * t + (1.0 - beta) * pred
    loss = jnp.maximum(x, 0.0) - x * t_new + jnp.log1p(jnp.exp(-jnp.abs(x)))
    if reduction == "mean":
        return jnp.mean(loss)
    if reduction == "sum":
        return jnp.sum(loss)
    return loss


if __name__ == "__main__":
    key = jax.random.PRNGKey(0)
    k1, k2, k3, k4 = jax.random.split(key, 4)

    # Small NCHW-like shape: batch=2, channels=4, spatial=16x16 (n = 2048).
    shape = (2, 4, 16, 16)
    logits = jax.random.normal(k1, shape, dtype=jnp.float32) * 2.0
    target = jax.random.uniform(k2, shape, dtype=jnp.float32)  # soft labels

    out_mean = jax.block_until_ready(
        lsoft_loss(logits, target, beta=0.5, reduction="mean"))
    ref_mean = _lsoft_loss_ref(logits, target, 0.5, "mean")
    assert jnp.allclose(out_mean, ref_mean, rtol=1e-5, atol=1e-5), (out_mean, ref_mean)

    out_sum = jax.block_until_ready(
        lsoft_loss(logits, target, beta=0.5, reduction="sum"))
    ref_sum = _lsoft_loss_ref(logits, target, 0.5, "sum")
    assert jnp.allclose(out_sum, ref_sum, rtol=1e-5, atol=1e-4), (out_sum, ref_sum)

    out_none = jax.block_until_ready(
        lsoft_loss(logits, target, beta=0.5, reduction="none"))
    ref_none = _lsoft_loss_ref(logits, target, 0.5, "none")
    assert out_none.shape == shape
    assert jnp.allclose(out_none, ref_none, rtol=1e-5, atol=1e-5)

    # Flat size is a multiple of 1024 but not of the block size: exercises the
    # multi-tile path with an in-kernel-masked ragged final row-block and
    # requires no host-side padding or slicing (600 rows of 1024).
    shape2 = (4, 150, 1024)
    logits2 = jax.random.normal(k3, shape2, dtype=jnp.float32) * 2.0
    target2 = jax.random.uniform(k4, shape2, dtype=jnp.float32)
    out2 = jax.block_until_ready(
        lsoft_loss(logits2, target2, beta=0.3, reduction="mean"))
    ref2 = _lsoft_loss_ref(logits2, target2, 0.3, "mean")
    assert jnp.allclose(out2, ref2, rtol=1e-4, atol=1e-5), (out2, ref2)

    # Flat size not a multiple of the lane width: exercises the plain-JAX tail.
    shape3 = (2, 4, 16, 17)   # n = 2176 = 2*1024 + 128
    logits3 = jax.random.normal(k1, shape3, dtype=jnp.float32)
    target3 = jax.random.uniform(k2, shape3, dtype=jnp.float32)
    out3 = jax.block_until_ready(
        lsoft_loss(logits3, target3, beta=0.5, reduction="sum"))
    ref3 = _lsoft_loss_ref(logits3, target3, 0.5, "sum")
    assert jnp.allclose(out3, ref3, rtol=1e-5, atol=1e-3), (out3, ref3)

    print("KERNEL_OK")
</pallas_src>

<mosaic_0001>
module attributes {stable_mosaic.version = 11 : i64} {
  func.func @_lsoft_reduce_kernel(%arg0: i32, %arg1: i32, %arg2: memref<2x1024xf32, #tpu.memory_space<vmem>>, %arg3: memref<2x1024xf32, #tpu.memory_space<vmem>>, %arg4: memref<1x1x1xf32, #tpu.memory_space<vmem>>, %arg5: memref<2x1024xf32, #tpu.memory_space<vmem>>) attributes {dimension_semantics = [#tpu.dimension_semantics<parallel>, #tpu.dimension_semantics<arbitrary>], iteration_bounds = array<i64: 1, 1>, scalar_prefetch = 0 : i64, scratch_operands = 1 : i64, tpu.core_type = #tpu.core_type<tc>, window_params = [{transform_indices = @transform_0, window_bounds = array<i64: 2, 1024>}, {transform_indices = @transform_1, window_bounds = array<i64: 2, 1024>}, {transform_indices = @transform_2, window_bounds = array<i64: 1, 1, 1>}]} {
    %c0_i32 = arith.constant 0 : i32
    %0 = arith.cmpi eq, %arg1, %c0_i32 : i32
    %1 = arith.extui %0 : i1 to i32
    %c0_i32_0 = arith.constant 0 : i32
    %2 = arith.cmpi ne, %1, %c0_i32_0 : i32
    scf.if %2 {
      %cst_16 = arith.constant 0.000000e+00 : f32
      %33 = vector.broadcast %cst_16 : f32 to vector<2x1024xf32>
      %c0_17 = arith.constant 0 : index
      %c0_18 = arith.constant 0 : index
      %34 = vector.load %arg5[%c0_17, %c0_18] : memref<2x1024xf32, #tpu.memory_space<vmem>>, vector<2x1024xf32>
      tpu.vector_store %arg5[%c0_17, %c0_18], %33 {strides = array<i32>} : memref<2x1024xf32, #tpu.memory_space<vmem>>, vector<2x1024xf32>,
    } else {
    }
    %c0 = arith.constant 0 : index
    %c0_1 = arith.constant 0 : index
    %3 = vector.load %arg2[%c0, %c0_1] : memref<2x1024xf32, #tpu.memory_space<vmem>>, vector<2x1024xf32>
    %c0_2 = arith.constant 0 : index
    %c0_3 = arith.constant 0 : index
    %4 = vector.load %arg3[%c0_2, %c0_3] : memref<2x1024xf32, #tpu.memory_space<vmem>>, vector<2x1024xf32>
    %cst = arith.constant 5.000000e-01 : f32
    %5 = vector.broadcast %cst : f32 to vector<2x1024xf32>
    %6 = arith.mulf %5, %3 : vector<2x1024xf32>
    %7 = math.tanh %6 : vector<2x1024xf32>
    %cst_4 = arith.constant 5.000000e-01 : f32
    %8 = vector.broadcast %cst_4 : f32 to vector<2x1024xf32>
    %9 = arith.mulf %8, %7 : vector<2x1024xf32>
    %cst_5 = arith.constant 5.000000e-01 : f32
    %10 = vector.broadcast %cst_5 : f32 to vector<2x1024xf32>
    %11 = arith.addf %9, %10 : vector<2x1024xf32>
    %cst_6 = arith.constant 5.000000e-01 : f32
    %12 = vector.broadcast %cst_6 : f32 to vector<2x1024xf32>
    %13 = arith.mulf %12, %4 : vector<2x1024xf32>
    %cst_7 = arith.constant 5.000000e-01 : f32
    %14 = vector.broadcast %cst_7 : f32 to vector<2x1024xf32>
    %15 = arith.mulf %14, %11 : vector<2x1024xf32>
    %16 = arith.addf %13, %15 : vector<2x1024xf32>
    %cst_8 = arith.constant 0.000000e+00 : f32
    %17 = vector.broadcast %cst_8 : f32 to vector<2x1024xf32>
    %18 = arith.maximumf %3, %17 : vector<2x1024xf32>
    %19 = arith.mulf %3, %16 : vector<2x1024xf32>
    %20 = arith.subf %18, %19 : vector<2x1024xf32>
    %21 = math.absf %3 : vector<2x1024xf32>
    %cst_9 = arith.constant 0.000000e+00 : f32
    %22 = vector.broadcast %cst_9 : f32 to vector<2x1024xf32>
    %23 = arith.subf %22, %21 : vector<2x1024xf32>
    %24 = math.exp %23 : vector<2x1024xf32>
    %25 = math.log1p %24 : vector<2x1024xf32>
    %26 = arith.addf %20, %25 : vector<2x1024xf32>
    %c0_10 = arith.constant 0 : index
    %c0_11 = arith.constant 0 : index
    %27 = vector.load %arg5[%c0_10, %c0_11] : memref<2x1024xf32, #tpu.memory_space<vmem>>, vector<2x1024xf32>
    %28 = arith.addf %27, %26 : vector<2x1024xf32>
    %c0_12 = arith.constant 0 : index
    %c0_13 = arith.constant 0 : index
    %29 = vector.load %arg5[%c0_12, %c0_13] : memref<2x1024xf32, #tpu.memory_space<vmem>>, vector<2x1024xf32>
    tpu.vector_store %arg5[%c0_12, %c0_13], %28 {strides = array<i32>} : memref<2x1024xf32, #tpu.memory_space<vmem>>, vector<2x1024xf32>,
    %c0_i32_14 = arith.constant 0 : i32
    %30 = arith.cmpi eq, %arg1, %c0_i32_14 : i32
    %31 = arith.extui %30 : i1 to i32
    %c0_i32_15 = arith.constant 0 : i32
    %32 = arith.cmpi ne, %31, %c0_i32_15 : i32
    scf.if %32 {
      %c0_16 = arith.constant 0 : index
      %c0_17 = arith.constant 0 : index
      %33 = vector.load %arg5[%c0_16, %c0_17] : memref<2x1024xf32, #tpu.memory_space<vmem>>, vector<2x1024xf32>
      %34 = vector.shape_cast %33 : vector<2x1024xf32> to vector<1x2x1024xf32>
      %cst_18 = arith.constant dense<0.000000e+00> : vector<1xf32>
      %35 = vector.multi_reduction <add>, %34, %cst_18 [1, 2] : vector<1x2x1024xf32> to vector<1xf32>
      %36 = vector.shape_cast %35 : vector<1xf32> to vector<1x1x1xf32>
      %37 = vector.extract %36[0, 0, 0] : f32 from vector<1x1x1xf32>
      %38 = vector.broadcast %37 : f32 to vector<1x1x1xf32>
      %c0_19 = arith.constant 0 : index
      %c0_20 = arith.constant 0 : index
      %c0_21 = arith.constant 0 : index
      %39 = vector.load %arg4[%c0_19, %c0_20, %c0_21] : memref<1x1x1xf32, #tpu.memory_space<vmem>>, vector<1x1x1xf32>
      tpu.vector_store %arg4[%c0_19, %c0_20, %c0_21], %38 {strides = array<i32>} : memref<1x1x1xf32, #tpu.memory_space<vmem>>, vector<1x1x1xf32>,
    } else {
    }
    return
  }
  func.func @transform_0(%arg0: i32, %arg1: i32) -> (i32, i32) {
    %c1_i32 = arith.constant 1 : i32
    %0 = arith.muli %arg0, %c1_i32 : i32
    %1 = arith.addi %0, %arg1 : i32
    %c0_i32 = arith.constant 0 : i32
    %c0_i32_0 = arith.constant 0 : i32
    return %1, %c0_i32 : i32, i32
  }
  func.func @transform_1(%arg0: i32, %arg1: i32) -> (i32, i32) {
    %c1_i32 = arith.constant 1 : i32
    %0 = arith.muli %arg0, %c1_i32 : i32
    %1 = arith.addi %0, %arg1 : i32
    %c0_i32 = arith.constant 0 : i32
    %c0_i32_0 = arith.constant 0 : i32
    return %1, %c0_i32 : i32, i32
  }
  func.func @transform_2(%arg0: i32, %arg1: i32) -> (i32, i32, i32) {
    %c0_i32 = arith.constant 0 : i32
    %c0_i32_0 = arith.constant 0 : i32
    %c0_i32_1 = arith.constant 0 : i32
    return %arg0, %c0_i32, %c0_i32_0 : i32, i32, i32
  }
}

</mosaic_0001>

<llo_original>
// kernel: tpu_custom_call.1
$region0: #{tpu_custom_call.1}
  #allocation0 [shape = 'u32[]', space=smem, size = 0x4, offset = 0x4, fixed_abs, tag = 'smem constant byte address 0x4 - core index']
  #allocation1 [shape = 'u32[144,128]{1,0:T(1,128)}', space=vmem, size = 0x12000, scoped, tag = 'internal scratch']
  #allocation2 [shape = 'f32[2,1024]{1,0:T(2,128)}', space=vmem, size = 0x2000, scoped, tag = 'scratch operand']
  %s0 = inlined_call_operand.hbm [shape: f32[2,1024], index: 0, kind: input, shape index: {}]
  %s1 = inlined_call_operand.hbm [shape: f32[2,1024], index: 1, kind: input, shape index: {}]
  %s2 = inlined_call_operand.hbm [shape: f32[1,1,1], index: 2, kind: output, shape index: {}]
  %s3 = sld [smem:[#allocation0]]
  $region34: #{tpu_custom_call.1} parent=0
    _
  %s5 = ssub.s32 1, %s3
  %s6 = scalar_select 0, %s5, %s3
  $region1: #{tpu_custom_call.1} parent=0
    #allocation3 [shape = 'u8[8192]{0}', space=vmem, size = 0x2000, scoped, tag = 'input window, operand 0, single buffered']
    #allocation4 [shape = 's32[1]{0}', space=sflag, size = 0x4, scoped, tag = 'scoped memory for tpu_custom_call.1']
    #allocation5 [shape = 's32[1]{0}', space=sflag, size = 0x4, scoped, tag = 'scoped memory for tpu_custom_call.1']
    #allocation6 [shape = 'u8[8192]{0}', space=vmem, size = 0x2000, scoped, tag = 'input window, operand 1, single buffered']
    #allocation7 [shape = 's32[1]{0}', space=sflag, size = 0x4, scoped, tag = 'scoped memory for tpu_custom_call.1']
    #allocation8 [shape = 'u8[512]{0}', space=vmem, size = 0x400, scoped, tag = 'output window, operand 0, single buffered']
    %7 = vsyncpa [#allocation4], 0
    %8 = vsyncpa [#allocation7], 0
    %9 = vsyncpa [#allocation5], 0
    // Predicated region
    $region2: #{tpu_custom_call.1} parent=1 // pred_check
      _
    $region3: #{tpu_custom_call.1} parent=1 // pred_check_branch
      %11 = sbr.rel (0) target = $region5
    $region4: #{tpu_custom_call.1} parent=1 // pred_region
      %s12 = sadd.s32 0, 0
      %s14 = ssub.s32 256, 256
      %15 = vsyncadd [#allocation4], %s14
      %s16 = smul.addr %s12, 8
      %s17 = smul.addr %s16, 32
      %s18 = scalar_lea.hbm %s0, %s17
      %s20 = sshll.u32 [#allocation3], 4
      %s21 = int_to_ptr.vmem [resolvable:$true] %s20
      %23 = dma.hbm_to_vmem [thread:$0]  %s18, 256, %s21, [#allocation4]
    $region5: #{tpu_custom_call.1} parent=1 // pred_fallthru
      _
    // Predicated region
    $region6: #{tpu_custom_call.1} parent=1 // pred_check
      _
    $region7: #{tpu_custom_call.1} parent=1 // pred_check_branch
      %25 = sbr.rel (0) target = $region9
    $region8: #{tpu_custom_call.1} parent=1 // pred_region
      %s26 = sadd.s32 0, 0
      %s28 = ssub.s32 256, 256
      %29 = vsyncadd [#allocation7], %s28
      %s30 = smul.addr %s26, 8
      %s31 = smul.addr %s30, 32
      %s32 = scalar_lea.hbm %s1, %s31
      %s34 = sshll.u32 [#allocation6], 4
      %s35 = int_to_ptr.vmem [resolvable:$true] %s34
      %37 = dma.hbm_to_vmem [thread:$0]  %s32, 256, %s35, [#allocation7]
    $region9: #{tpu_custom_call.1} parent=1 // pred_fallthru
      _
    // Predicated region
    $region10: #{tpu_custom_call.1} parent=1 // pred_check
      _
    $region11: #{tpu_custom_call.1} parent=1 // pred_check_branch
      %39 = sbr.rel (0) target = $region13
    $region12: #{tpu_custom_call.1} parent=1 // pred_region
      %40 = dma.done [#allocation4], 256
    $region13: #{tpu_custom_call.1} parent=1 // pred_fallthru
      _
    // Predicated region
    $region14: #{tpu_custom_call.1} parent=1 // pred_check
      _
    $region15: #{tpu_custom_call.1} parent=1 // pred_check_branch
      %42 = sbr.rel (0) target = $region17
    $region16: #{tpu_custom_call.1} parent=1 // pred_region
      %43 = dma.done [#allocation7], 256
    $region17: #{tpu_custom_call.1} parent=1 // pred_fallthru
      _
    %s44 = sadd.s32 0, 0
    %s45 = sadd.s32 0, 0
    %p46 = scmp.eq.s32.totalorder 0, 0
    // Predicated region
    $region18: #{tpu_custom_call.1} parent=1 // pred_check
      %p47 = pneg %p46
    $region19: #{tpu_custom_call.1} parent=1 // pred_check_branch
      %49 = sbr.rel (%p47) target = $region21
    $region20: #{tpu_custom_call.1} parent=1 // pred_region
      %50 = vst [vmem:[#allocation2] sm:$0xff] 0.0
      %51 = vst [vmem:[#allocation2 + $0x8] sm:$0xff] 0.0
    $region21: #{tpu_custom_call.1} parent=1 // pred_fallthru
      _
    %v52 = vld [vmem:[#allocation3] sm:$0xff]
    %v53 = vld [vmem:[#allocation3 + $0x8] sm:$0xff]
    %v54 = vld [vmem:[#allocation6] sm:$0xff]
    %v55 = vld [vmem:[#allocation6 + $0x8] sm:$0xff]
    %v56 = vmul.f32 %v52, 0.5
    %v57 = vmul.f32 %v53, 0.5
    %v58 = vtanh.pop %v56
    %v59 = vtanh.pop %v57
    %v60 = vmul.f32 %v58, 0.5
    %v61 = vmul.f32 %v59, 0.5
    %v62 = vadd.f32 %v60, 0.5
    %v63 = vadd.f32 %v61, 0.5
    %v64 = vmul.f32 %v54, 0.5
    %v65 = vmul.f32 %v55, 0.5
    %v66 = vmul.f32 %v62, 0.5
    %v67 = vmul.f32 %v63, 0.5
    %v68 = vadd.f32 %v64, %v66
    %v69 = vadd.f32 %v65, %v67
    %v70 = vmax.f32 %v52, 0.0
    %v71 = vmax.f32 %v53, 0.0
    %v72 = vmul.f32 %v52, %v68
    %v73 = vmul.f32 %v53, %v69
    %v74 = vsub.f32 %v70, %v72
    %v75 = vsub.f32 %v71, %v73
    %v76 = vand.u32 2147483647, %v52
    %v77 = vand.u32 2147483647, %v53
    %v78 = vsub.f32 0.0, %v76
    %v79 = vsub.f32 0.0, %v77
    %v80 = vmul.f32 %v78, 1.442695
    %v81 = vpow.pop %v80
    %v82 = vmul.f32 %v79, 1.442695
    %v83 = vpow.pop %v82
    %v84 = vadd.f32 %v81, 1.0
    %v85 = vlog2.pop %v84
    %v86 = vmul.f32 %v85, 0.6931472
    %v87 = vmul.f32 -0.5, %v81
    %v88 = vadd.f32 %v87, 1.0
    %v89 = vmul.f32 %v88, %v81
    %v90 = vand.u32 2147483647, %v81
    %vm91 = vcmp.lt.f32.partialorder %v90, 0.0004427343
    %v92 = vsel %vm91, %v89, %v86
    %v93 = vadd.f32 %v83, 1.0
    %v94 = vlog2.pop %v93
    %v95 = vmul.f32 %v94, 0.6931472
    %v96 = vmul.f32 -0.5, %v83
    %v97 = vadd.f32 %v96, 1.0
    %v98 = vmul.f32 %v97, %v83
    %v99 = vand.u32 2147483647, %v83
    %vm100 = vcmp.lt.f32.partialorder %v99, 0.0004427343
    %v101 = vsel %vm100, %v98, %v95
    %v102 = vadd.f32 %v74, %v92
    %v103 = vadd.f32 %v75, %v101
    %v104 = vld [vmem:[#allocation2] sm:$0xff]
    %v105 = vld [vmem:[#allocation2 + $0x8] sm:$0xff]
    %v106 = vadd.f32 %v104, %v102
    %v107 = vadd.f32 %v105, %v103
    %108 = vst [vmem:[#allocation2] sm:$0xff] %v106
    %109 = vst [vmem:[#allocation2 + $0x8] sm:$0xff] %v107
    // Predicated region
    $region22: #{tpu_custom_call.1} parent=1 // pred_check
      %p110 = pneg %p46
    $region23: #{tpu_custom_call.1} parent=1 // pred_check_branch
      %112 = sbr.rel (%p110) target = $region25
    $region24: #{tpu_custom_call.1} parent=1 // pred_region
      %v113 = vld [vmem:[#allocation2] sm:$0xff]
      %v114 = vld [vmem:[#allocation2 + $0x8] sm:$0xff]
      %v117 = vcombine.high %v113, %v113
      %v119 = vunpack.c.l.s4 1983009808
      %v120 = vunpack.c.0.s8 %v119
      %v121 = vlaneseq
      %v122 = vshrl.u32 %v121, 7
      %v123 = vsub.s32 %v120, %v122
      %v124 = vrot.slane %v113, %v123
      %v126 = vunpack.c.l.s4 1983009808
      %v127 = vunpack.c.0.s8 %v126
      %v128 = vlaneseq
      %v129 = vshrl.u32 %v128, 7
      %v130 = vsub.s32 %v127, %v129
      %v131 = vrot.slane %v117, %v130
      %v132 = vcombine.high %v124, %v124
      %v133 = vcombine.high %v131, %v131
      %v134 = vcombine.high %v114, %v114
      %v136 = vunpack.c.l.s4 1983009808
      %v137 = vunpack.c.0.s8 %v136
      %v138 = vlaneseq
      %v139 = vshrl.u32 %v138, 7
      %v140 = vsub.s32 %v137, %v139
      %v141 = vrot.slane %v114, %v140
      %v143 = vunpack.c.l.s4 1983009808
      %v144 = vunpack.c.0.s8 %v143
      %v145 = vlaneseq
      %v146 = vshrl.u32 %v145, 7
      %v147 = vsub.s32 %v144, %v146
      %v148 = vrot.slane %v134, %v147
      %v149 = vcombine.high %v141, %v141
      %v150 = vcombine.high %v148, %v148
      %vm159 = vcmask 1041408
      %v160 = vsel %vm159, %v124, 0.0
      %v161 = vsel %vm159, %v132, 0.0
      %v162 = vadd.f32 %v160, %v161
      %v163 = vsel %vm159, %v131, 0.0
      %v164 = vadd.f32 %v162, %v163
      %v165 = vsel %vm159, %v133, 0.0
      %v166 = vadd.f32 %v164, %v165
      %v167 = vsel %vm159, %v141, 0.0
      %v168 = vadd.f32 %v166, %v167
      %v169 = vsel %vm159, %v149, 0.0
      %v170 = vadd.f32 %v168, %v169
      %v171 = vsel %vm159, %v148, 0.0
      %v172 = vadd.f32 %v170, %v171
      %v173 = vsel %vm159, %v150, 0.0
      %v174 = vadd.f32 %v172, %v173
      %175 = vadd.xlane.f32.xlu0 %v174
      %v176 = vpop.xlane.xlu0 %175
      %v177 = vrot.slane %v176, 4
      %v178 = vadd.f32 %v176, %v177
      %v179 = vrot.slane %v178, 2
      %v180 = vadd.f32 %v178, %v179
      %v181 = vrot.slane %v180, 1
      %v182 = vadd.f32 %v180, %v181
      %s183 = vtos %v182
      %v184 = vstv %s183
      %vm185 = vcmask 0
      %186 = vst.msk [vmem:[#allocation8] sm:$0x1] %vm185, %v184
    $region25: #{tpu_custom_call.1} parent=1 // pred_fallthru
      _
    // Predicated region
    $region26: #{tpu_custom_call.1} parent=1 // pred_check
      _
    $region27: #{tpu_custom_call.1} parent=1 // pred_check_branch
      %188 = sbr.rel (0) target = $region29
    $region28: #{tpu_custom_call.1} parent=1 // pred_region
      %s190 = ssub.s32 16, 16
      %191 = vsyncadd [#allocation5], %s190
      %s193 = sshll.u32 [#allocation8], 4
      %s194 = int_to_ptr.vmem [resolvable:$true] %s193
      %196 = dma.vmem_to_hbm [thread:$0]  %s194, 16, %s2, [#allocation5]
    $region29: #{tpu_custom_call.1} parent=1 // pred_fallthru
      _
    // Predicated region
    $region30: #{tpu_custom_call.1} parent=1 // pred_check
      _
    $region31: #{tpu_custom_call.1} parent=1 // pred_check_branch
      %198 = sbr.rel (0) target = $region33
    $region32: #{tpu_custom_call.1} parent=1 // pred_region
      %199 = dma.done [#allocation5], 16
    $region33: #{tpu_custom_call.1} parent=1 // pred_fallthru
      _
    %200 = vsyncpa [#allocation4], 1
    %201 = vsyncpa [#allocation7], 1
    %202 = vsyncpa [#allocation5], 1

</llo_original>
